<compile_context>
chip_gen: v5e
topology: v5e:2x2
jax: 0.10.0
libtpu: 0.0.40
codegen_flags: <defaults>
</compile_context>

<pallas_src>
import functools

import jax
import jax.numpy as jnp
from jax.experimental import pallas as pl
from jax.experimental.pallas import tpu as pltpu


def _round_up(a: int, b: int) -> int:
    return ((a + b - 1) // b) * b


def _group_scaling_kernel(x_ref, o_ref, *, eps: float, group_num: int):
    # x_ref / o_ref: (tile_rows, C) VMEM tiles in the input dtype.
    x = x_ref[...]
    xf = x.astype(jnp.float32)
    rows, C = xf.shape
    Cg = C // group_num
    inv_cg = 1.0 / float(Cg)

    x2 = xf * xf
    # Static Python loop over groups (group_num is small).  Each group:
    # lane-contiguous slice -> sum reduce -> rsqrt scale (EUP), broadcast back
    # across that group's Cg lanes.  All scales are concatenated into one
    # (tile_rows, C) tensor so the store below is a single unmasked, lane-dense
    # full-width store (no per-group vst.msk partial stores).
    # TODO(synk): when Cg is badly lane-misaligned / group_num is large, the
    # per-group reduction could instead be one MXU matmul against a (C, G)
    # 0/1 indicator matrix.
    scale_cols = []
    for g in range(group_num):
        lo = g * Cg
        m2 = jnp.sum(x2[:, lo:lo + Cg], axis=-1, keepdims=True) * inv_cg  # (rows, 1)
        s = jax.lax.rsqrt(m2 + eps)                                       # (rows, 1)
        scale_cols.append(jnp.broadcast_to(s, (rows, Cg)))
    scale = jnp.concatenate(scale_cols, axis=-1)                          # (rows, C)

    o_ref[...] = (xf * scale).astype(o_ref.dtype)


def group_scaling_1d(x, eps: float = 1e-5, group_num: int = 4,
                     tile_rows: int | None = None,
                     vmem_limit_bytes: int = 48 * 1024 * 1024):
    """Pallas implementation of GroupScaling1D.forward.

    x: (T, B, C) array. Returns x / sqrt(group_mean(x*x) + eps), where the mean
    is over each contiguous group of C // group_num channels.
    """
    T, B, C = x.shape
    assert C % group_num == 0, "C must be divisible by group_num"
    rows = T * B

    itemsize = jnp.dtype(x.dtype).itemsize
    # Sublane packing: 8 rows for 32-bit, 16 for 16-bit, 32 for 8-bit dtypes.
    sublane_pack = 8 * max(1, 4 // itemsize)

    if tile_rows is None:
        # VMEM budget for choosing the tile: in + out tiles, double-buffered,
        # in the input dtype, plus ~4 f32-wide temporaries inside the kernel
        # (xf, x*x, scale, product).  Keep well under the scoped VMEM limit.
        budget_bytes = 32 * 1024 * 1024
        per_row_bytes = C * (4 * itemsize + 4 * 4)
        tile_rows = max(sublane_pack, budget_bytes // per_row_bytes)
        tile_rows = min(tile_rows, 1024)
    # Round down to the sublane packing and never exceed the (padded) problem.
    tile_rows = max(sublane_pack, (tile_rows // sublane_pack) * sublane_pack)
    tile_rows = min(tile_rows, _round_up(rows, sublane_pack))

    # Pad rows up to a multiple of tile_rows instead of ever mapping the whole
    # array into a single VMEM block.  Zero rows give 0 / sqrt(eps) = 0 and are
    # sliced off afterwards, so padding is numerically safe.
    padded_rows = _round_up(rows, tile_rows)

    x2 = x.reshape(rows, C)
    if padded_rows != rows:
        x2 = jnp.pad(x2, ((0, padded_rows - rows), (0, 0)))

    grid = (padded_rows // tile_rows,)
    kernel = functools.partial(_group_scaling_kernel, eps=eps, group_num=group_num)

    out = pl.pallas_call(
        kernel,
        out_shape=jax.ShapeDtypeStruct((padded_rows, C), x.dtype),
        grid_spec=pltpu.PrefetchScalarGridSpec(
            num_scalar_prefetch=0,
            grid=grid,
            in_specs=[pl.BlockSpec((tile_rows, C), lambda i: (i, 0))],
            out_specs=pl.BlockSpec((tile_rows, C), lambda i: (i, 0)),
        ),
        compiler_params=pltpu.CompilerParams(
            dimension_semantics=("parallel",),
            vmem_limit_bytes=vmem_limit_bytes,
        ),
    )(x2)

    if padded_rows != rows:
        out = out[:rows]
    return out.reshape(T, B, C)


def _reference(x, eps=1e-5, group_num=4):
    T, B, C = x.shape
    Cg = C // group_num
    g = x.reshape(T, B, group_num, Cg).astype(jnp.float32)
    m2 = jnp.mean(g * g, axis=3, keepdims=True)
    m2 = jnp.repeat(m2, Cg, axis=-1).reshape(T, B, C)
    return (x.astype(jnp.float32) / jnp.sqrt(m2 + eps)).astype(x.dtype)


if __name__ == "__main__":
    key = jax.random.PRNGKey(0)

    # Case 1: small shape matching the module layout (T, B, C), C < 128.
    T, B, C = 8, 2, 32
    x = jax.random.normal(key, (T, B, C), dtype=jnp.float32)
    out = jax.block_until_ready(group_scaling_1d(x, eps=1e-5, group_num=4))
    ref = _reference(x, eps=1e-5, group_num=4)
    assert out.shape == (T, B, C)
    assert jnp.allclose(out, ref, atol=1e-5, rtol=1e-5), "mismatch vs reference (case 1)"

    # Case 2: rows not a multiple of the sublane packing -> exercises the
    # row-padding path and lane-aligned C.
    T2, B2, C2 = 9, 3, 128
    x2 = jax.random.normal(jax.random.PRNGKey(1), (T2, B2, C2), dtype=jnp.float32)
    out2 = jax.block_until_ready(group_scaling_1d(x2, eps=1e-5, group_num=4))
    ref2 = _reference(x2, eps=1e-5, group_num=4)
    assert out2.shape == (T2, B2, C2)
    assert jnp.allclose(out2, ref2, atol=1e-5, rtol=1e-5), "mismatch vs reference (case 2)"

    print("KERNEL_OK")
</pallas_src>

<mosaic_0001>
module attributes {stable_mosaic.version = 11 : i64} {
  func.func @_group_scaling_kernel(%arg0: i32, %arg1: memref<16x32xf32, #tpu.memory_space<vmem>>, %arg2: memref<16x32xf32, #tpu.memory_space<vmem>>) attributes {dimension_semantics = [#tpu.dimension_semantics<parallel>], iteration_bounds = array<i64: 1>, scalar_prefetch = 0 : i64, scratch_operands = 0 : i64, tpu.core_type = #tpu.core_type<tc>, window_params = [{transform_indices = @transform_0, window_bounds = array<i64: 16, 32>}, {transform_indices = @transform_1, window_bounds = array<i64: 16, 32>}]} {
    %c0 = arith.constant 0 : index
    %c0_0 = arith.constant 0 : index
    %0 = vector.load %arg1[%c0, %c0_0] : memref<16x32xf32, #tpu.memory_space<vmem>>, vector<16x32xf32>
    %1 = arith.mulf %0, %0 : vector<16x32xf32>
    %2 = vector.extract_strided_slice %1 {offsets = [0, 0], sizes = [16, 8], strides = [1, 1]} : vector<16x32xf32> to vector<16x8xf32>
    %cst = arith.constant dense<0.000000e+00> : vector<16xf32>
    %3 = vector.multi_reduction <add>, %2, %cst [1] : vector<16x8xf32> to vector<16xf32>
    %4 = vector.shape_cast %3 : vector<16xf32> to vector<16x1xf32>
    %cst_1 = arith.constant 1.250000e-01 : f32
    %5 = vector.broadcast %cst_1 : f32 to vector<16x1xf32>
    %6 = arith.mulf %4, %5 : vector<16x1xf32>
    %cst_2 = arith.constant 9.99999974E-6 : f32
    %7 = vector.broadcast %cst_2 : f32 to vector<16x1xf32>
    %8 = arith.addf %6, %7 : vector<16x1xf32>
    %9 = math.rsqrt %8 : vector<16x1xf32>
    %10 = vector.shape_cast %9 : vector<16x1xf32> to vector<16x1xf32>
    %11 = vector.broadcast %10 : vector<16x1xf32> to vector<16x8xf32>
    %12 = vector.extract_strided_slice %1 {offsets = [0, 8], sizes = [16, 8], strides = [1, 1]} : vector<16x32xf32> to vector<16x8xf32>
    %cst_3 = arith.constant dense<0.000000e+00> : vector<16xf32>
    %13 = vector.multi_reduction <add>, %12, %cst_3 [1] : vector<16x8xf32> to vector<16xf32>
    %14 = vector.shape_cast %13 : vector<16xf32> to vector<16x1xf32>
    %cst_4 = arith.constant 1.250000e-01 : f32
    %15 = vector.broadcast %cst_4 : f32 to vector<16x1xf32>
    %16 = arith.mulf %14, %15 : vector<16x1xf32>
    %cst_5 = arith.constant 9.99999974E-6 : f32
    %17 = vector.broadcast %cst_5 : f32 to vector<16x1xf32>
    %18 = arith.addf %16, %17 : vector<16x1xf32>
    %19 = math.rsqrt %18 : vector<16x1xf32>
    %20 = vector.shape_cast %19 : vector<16x1xf32> to vector<16x1xf32>
    %21 = vector.broadcast %20 : vector<16x1xf32> to vector<16x8xf32>
    %22 = vector.extract_strided_slice %1 {offsets = [0, 16], sizes = [16, 8], strides = [1, 1]} : vector<16x32xf32> to vector<16x8xf32>
    %cst_6 = arith.constant dense<0.000000e+00> : vector<16xf32>
    %23 = vector.multi_reduction <add>, %22, %cst_6 [1] : vector<16x8xf32> to vector<16xf32>
    %24 = vector.shape_cast %23 : vector<16xf32> to vector<16x1xf32>
    %cst_7 = arith.constant 1.250000e-01 : f32
    %25 = vector.broadcast %cst_7 : f32 to vector<16x1xf32>
    %26 = arith.mulf %24, %25 : vector<16x1xf32>
    %cst_8 = arith.constant 9.99999974E-6 : f32
    %27 = vector.broadcast %cst_8 : f32 to vector<16x1xf32>
    %28 = arith.addf %26, %27 : vector<16x1xf32>
    %29 = math.rsqrt %28 : vector<16x1xf32>
    %30 = vector.shape_cast %29 : vector<16x1xf32> to vector<16x1xf32>
    %31 = vector.broadcast %30 : vector<16x1xf32> to vector<16x8xf32>
    %32 = vector.extract_strided_slice %1 {offsets = [0, 24], sizes = [16, 8], strides = [1, 1]} : vector<16x32xf32> to vector<16x8xf32>
    %cst_9 = arith.constant dense<0.000000e+00> : vector<16xf32>
    %33 = vector.multi_reduction <add>, %32, %cst_9 [1] : vector<16x8xf32> to vector<16xf32>
    %34 = vector.shape_cast %33 : vector<16xf32> to vector<16x1xf32>
    %cst_10 = arith.constant 1.250000e-01 : f32
    %35 = vector.broadcast %cst_10 : f32 to vector<16x1xf32>
    %36 = arith.mulf %34, %35 : vector<16x1xf32>
    %cst_11 = arith.constant 9.99999974E-6 : f32
    %37 = vector.broadcast %cst_11 : f32 to vector<16x1xf32>
    %38 = arith.addf %36, %37 : vector<16x1xf32>
    %39 = math.rsqrt %38 : vector<16x1xf32>
    %40 = vector.shape_cast %39 : vector<16x1xf32> to vector<16x1xf32>
    %41 = vector.broadcast %40 : vector<16x1xf32> to vector<16x8xf32>
    %42 = tpu.concatenate %11, %21, %31, %41 in 1 : vector<16x8xf32>, vector<16x8xf32>, vector<16x8xf32>, vector<16x8xf32> -> vector<16x32xf32>
    %43 = arith.mulf %0, %42 : vector<16x32xf32>
    %c0_12 = arith.constant 0 : index
    %c0_13 = arith.constant 0 : index
    %44 = vector.load %arg2[%c0_12, %c0_13] : memref<16x32xf32, #tpu.memory_space<vmem>>, vector<16x32xf32>
    tpu.vector_store %arg2[%c0_12, %c0_13], %43 {strides = array<i32>} : memref<16x32xf32, #tpu.memory_space<vmem>>, vector<16x32xf32>,
    return
  }
  func.func @transform_0(%arg0: i32) -> (i32, i32) {
    %c0_i32 = arith.constant 0 : i32
    %c0_i32_0 = arith.constant 0 : i32
    return %arg0, %c0_i32 : i32, i32
  }
  func.func @transform_1(%arg0: i32) -> (i32, i32) {
    %c0_i32 = arith.constant 0 : i32
    %c0_i32_0 = arith.constant 0 : i32
    return %arg0, %c0_i32 : i32, i32
  }
}

</mosaic_0001>

<llo_original>
// kernel: tpu_custom_call.1
$region0: #{tpu_custom_call.1}
  #allocation0 [shape = 'u32[]', space=smem, size = 0x4, offset = 0x4, fixed_abs, tag = 'smem constant byte address 0x4 - core index']
  #allocation1 [shape = 'u32[72,128]{1,0:T(1,128)}', space=vmem, size = 0x9000, scoped, tag = 'internal scratch']
  %s0 = inlined_call_operand.hbm [shape: f32[16,32], index: 0, kind: input, shape index: {}]
  %s1 = inlined_call_operand.hbm [shape: f32[16,32], index: 1, kind: output, shape index: {}]
  %s2 = sld [smem:[#allocation0]]
  $region18: #{tpu_custom_call.1} parent=0
    _
  %s4 = ssub.s32 1, %s2
  %s5 = scalar_select 0, %s4, %s2
  $region1: #{tpu_custom_call.1} parent=0
    #allocation2 [shape = 'u8[8192]{0}', space=vmem, size = 0x2000, scoped, tag = 'input window, operand 0, single buffered']
    #allocation3 [shape = 's32[1]{0}', space=sflag, size = 0x4, scoped, tag = 'scoped memory for tpu_custom_call.1']
    #allocation4 [shape = 's32[1]{0}', space=sflag, size = 0x4, scoped, tag = 'scoped memory for tpu_custom_call.1']
    #allocation5 [shape = 'u8[8192]{0}', space=vmem, size = 0x2000, scoped, tag = 'output window, operand 0, single buffered']
    %6 = vsyncpa [#allocation3], 0
    %7 = vsyncpa [#allocation4], 0
    // Predicated region
    $region2: #{tpu_custom_call.1} parent=1 // pred_check
      _
    $region3: #{tpu_custom_call.1} parent=1 // pred_check_branch
      %9 = sbr.rel (0) target = $region5
    $region4: #{tpu_custom_call.1} parent=1 // pred_region
      %11 = vsyncadd [#allocation3], 0
      %s12 = sshll.u32 %s0, 4
      %s13 = int_to_ptr.hbm [resolvable:$true] %s12
      %s14 = sshll.u32 [#allocation2], 4
      %s15 = int_to_ptr.vmem [resolvable:$true] %s14
      %20 = dma.hbm_to_vmem [thread:$0]  %s13, 256, %s15, [#allocation3], 128, 128, 8
    $region5: #{tpu_custom_call.1} parent=1 // pred_fallthru
      _
    // Predicated region
    $region6: #{tpu_custom_call.1} parent=1 // pred_check
      _
    $region7: #{tpu_custom_call.1} parent=1 // pred_check_branch
      %22 = sbr.rel (0) target = $region9
    $region8: #{tpu_custom_call.1} parent=1 // pred_region
      %24 = dma.done [#allocation3], 256
    $region9: #{tpu_custom_call.1} parent=1 // pred_fallthru
      _
    %v25 = vld [vmem:[#allocation2] sm:$0xff]
    %v26 = vld [vmem:[#allocation2 + $0x8] sm:$0xff]
    %v27 = vmul.f32 %v25, %v25
    %v28 = vmul.f32 %v26, %v26
    %vm29 = vcmask 64512
    %v30 = vsel %vm29, %v27, 0.0
    %31 = vadd.xlane.f32.xlu0 %v30
    %v32 = vpop.xlane.xlu0 %31
    %v33 = vsel %vm29, %v28, 0.0
    %34 = vadd.xlane.f32.xlu0 %v33
    %v35 = vpop.xlane.xlu0 %34
    %v36 = vmul.f32 %v32, 0.125
    %v37 = vmul.f32 %v35, 0.125
    %v38 = vadd.f32 %v36, 1e-05
    %v39 = vadd.f32 %v37, 1e-05
    %v40 = vrsqrt.pop %v38
    %v41 = vmul.f32 %v40, %v38
    %v42 = vmul.f32 %v41, %v40
    %v43 = vmul.f32 0.5, %v42
    %v44 = vsub.f32 1.5, %v43
    %v45 = vmul.f32 %v40, %v44
    %vm46 = vweird.f32 %v38
    %vm47 = vweird.f32 %v40
    %vm48 = vmor %vm46, %vm47
    %v49 = vsel %vm48, %v40, %v45
    %v50 = vrsqrt.pop %v39
    %v51 = vmul.f32 %v50, %v39
    %v52 = vmul.f32 %v51, %v50
    %v53 = vmul.f32 0.5, %v52
    %v54 = vsub.f32 1.5, %v53
    %v55 = vmul.f32 %v50, %v54
    %vm56 = vweird.f32 %v39
    %vm57 = vweird.f32 %v50
    %vm58 = vmor %vm56, %vm57
    %v59 = vsel %vm58, %v50, %v55
    %62 = vrot.lane.b32.xlu0 %v27, 120
    %v63 = vpop.permute.xlu0 %62
    %64 = vrot.lane.b32.xlu0 %v28, 120
    %v65 = vpop.permute.xlu0 %64
    %v68 = vsel %vm29, %v63, 0.0
    %69 = vadd.xlane.f32.xlu0 %v68
    %v70 = vpop.xlane.xlu0 %69
    %v71 = vsel %vm29, %v65, 0.0
    %72 = vadd.xlane.f32.xlu0 %v71
    %v73 = vpop.xlane.xlu0 %72
    %v74 = vmul.f32 %v70, 0.125
    %v75 = vmul.f32 %v73, 0.125
    %v76 = vadd.f32 %v74, 1e-05
    %v77 = vadd.f32 %v75, 1e-05
    %v78 = vrsqrt.pop %v76
    %v79 = vmul.f32 %v78, %v76
    %v80 = vmul.f32 %v79, %v78
    %v81 = vmul.f32 0.5, %v80
    %v82 = vsub.f32 1.5, %v81
    %v83 = vmul.f32 %v78, %v82
    %vm84 = vweird.f32 %v76
    %vm85 = vweird.f32 %v78
    %vm86 = vmor %vm84, %vm85
    %v87 = vsel %vm86, %v78, %v83
    %v88 = vrsqrt.pop %v77
    %v89 = vmul.f32 %v88, %v77
    %v90 = vmul.f32 %v89, %v88
    %v91 = vmul.f32 0.5, %v90
    %v92 = vsub.f32 1.5, %v91
    %v93 = vmul.f32 %v88, %v92
    %vm94 = vweird.f32 %v77
    %vm95 = vweird.f32 %v88
    %vm96 = vmor %vm94, %vm95
    %v97 = vsel %vm96, %v88, %v93
    %98 = vrot.lane.b32.xlu0 %v27, 112
    %v99 = vpop.permute.xlu0 %98
    %100 = vrot.lane.b32.xlu0 %v28, 112
    %v101 = vpop.permute.xlu0 %100
    %v104 = vsel %vm29, %v99, 0.0
    %105 = vadd.xlane.f32.xlu0 %v104
    %v106 = vpop.xlane.xlu0 %105
    %v107 = vsel %vm29, %v101, 0.0
    %108 = vadd.xlane.f32.xlu0 %v107
    %v109 = vpop.xlane.xlu0 %108
    %v110 = vmul.f32 %v106, 0.125
    %v111 = vmul.f32 %v109, 0.125
    %v112 = vadd.f32 %v110, 1e-05
    %v113 = vadd.f32 %v111, 1e-05
    %v114 = vrsqrt.pop %v112
    %v115 = vmul.f32 %v114, %v112
    %v116 = vmul.f32 %v115, %v114
    %v117 = vmul.f32 0.5, %v116
    %v118 = vsub.f32 1.5, %v117
    %v119 = vmul.f32 %v114, %v118
    %vm120 = vweird.f32 %v112
    %vm121 = vweird.f32 %v114
    %vm122 = vmor %vm120, %vm121
    %v123 = vsel %vm122, %v114, %v119
    %v124 = vrsqrt.pop %v113
    %v125 = vmul.f32 %v124, %v113
    %v126 = vmul.f32 %v125, %v124
    %v127 = vmul.f32 0.5, %v126
    %v128 = vsub.f32 1.5, %v127
    %v129 = vmul.f32 %v124, %v128
    %vm130 = vweird.f32 %v113
    %vm131 = vweird.f32 %v124
    %vm132 = vmor %vm130, %vm131
    %v133 = vsel %vm132, %v124, %v129
    %134 = vrot.lane.b32.xlu0 %v27, 104
    %v135 = vpop.permute.xlu0 %134
    %136 = vrot.lane.b32.xlu0 %v28, 104
    %v137 = vpop.permute.xlu0 %136
    %v140 = vsel %vm29, %v135, 0.0
    %141 = vadd.xlane.f32.xlu0 %v140
    %v142 = vpop.xlane.xlu0 %141
    %v143 = vsel %vm29, %v137, 0.0
    %144 = vadd.xlane.f32.xlu0 %v143
    %v145 = vpop.xlane.xlu0 %144
    %v146 = vmul.f32 %v142, 0.125
    %v147 = vmul.f32 %v145, 0.125
    %v148 = vadd.f32 %v146, 1e-05
    %v149 = vadd.f32 %v147, 1e-05
    %v150 = vrsqrt.pop %v148
    %v151 = vmul.f32 %v150, %v148
    %v152 = vmul.f32 %v151, %v150
    %v153 = vmul.f32 0.5, %v152
    %v154 = vsub.f32 1.5, %v153
    %v155 = vmul.f32 %v150, %v154
    %vm156 = vweird.f32 %v148
    %vm157 = vweird.f32 %v150
    %vm158 = vmor %vm156, %vm157
    %v159 = vsel %vm158, %v150, %v155
    %v160 = vrsqrt.pop %v149
    %v161 = vmul.f32 %v160, %v149
    %v162 = vmul.f32 %v161, %v160
    %v163 = vmul.f32 0.5, %v162
    %v164 = vsub.f32 1.5, %v163
    %v165 = vmul.f32 %v160, %v164
    %vm166 = vweird.f32 %v149
    %vm167 = vweird.f32 %v160
    %vm168 = vmor %vm166, %vm167
    %v169 = vsel %vm168, %v160, %v165
    %v170 = vsel %vm29, %v49, %v87
    %v171 = vsel %vm29, %v59, %v97
    %vm172 = vcmask 130048
    %v173 = vsel %vm172, %v170, %v123
    %v174 = vsel %vm172, %v171, %v133
    %vm175 = vcmask 195584
    %v176 = vsel %vm175, %v173, %v159
    %v177 = vsel %vm175, %v174, %v169
    %v178 = vmul.f32 %v25, %v176
    %v179 = vmul.f32 %v26, %v177
    %vm180 = vcmask 261120
    %181 = vst.msk [vmem:[#allocation5] sm:$0xff] %vm180, %v178
    %182 = vst.msk [vmem:[#allocation5 + $0x8] sm:$0xff] %vm180, %v179
    // Predicated region
    $region10: #{tpu_custom_call.1} parent=1 // pred_check
      _
    $region11: #{tpu_custom_call.1} parent=1 // pred_check_branch
      %184 = sbr.rel (0) target = $region13
    $region12: #{tpu_custom_call.1} parent=1 // pred_region
      %186 = vsyncadd [#allocation4], 0
      %s187 = sshll.u32 [#allocation5], 4
      %s188 = int_to_ptr.vmem [resolvable:$true] %s187
      %s189 = sshll.u32 %s1, 4
      %s190 = int_to_ptr.hbm [resolvable:$true] %s189
      %195 = dma.vmem_to_hbm [thread:$0]  %s188, 256, %s190, [#allocation4], 128, 128, 8
    $region13: #{tpu_custom_call.1} parent=1 // pred_fallthru
      _
    // Predicated region
    $region14: #{tpu_custom_call.1} parent=1 // pred_check
      _
    $region15: #{tpu_custom_call.1} parent=1 // pred_check_branch
      %197 = sbr.rel (0) target = $region17
    $region16: #{tpu_custom_call.1} parent=1 // pred_region
      %199 = dma.done [#allocation4], 256
    $region17: #{tpu_custom_call.1} parent=1 // pred_fallthru
      _
    %200 = vsyncpa [#allocation3], 1
    %201 = vsyncpa [#allocation4], 1

</llo_original>
